<compile_context>
chip_gen: v5e
topology: v5e:2x2
jax: 0.10.0
libtpu: 0.0.40
codegen_flags: <defaults>
</compile_context>

<pallas_src>
import functools

import jax
import jax.numpy as jnp
from jax.experimental import pallas as pl
from jax.experimental.pallas import tpu as pltpu


def _round_up(v, m):
    return ((v + m - 1) // m) * m


def _clip_kernel(texts_ref, images_ref, *out_refs, mean_mode, with_sim):
    if with_sim:
        sim_ref, prob_ref, sel_ref = out_refs
    else:
        sim_ref = None
        prob_ref, sel_ref = out_refs

    t_raw = texts_ref[...]          # [Bt, S, D]   (f32 or bf16)
    im = images_ref[...]            # [Bt, N, D]   (f32 or bf16)
    n = im.shape[1]

    # --- per-sentence inverse L2 norm, in f32 (zero rows -> 0, never inf/NaN)
    t32 = t_raw.astype(jnp.float32)
    sumsq = jnp.sum(t32 * t32, axis=-1, keepdims=True)             # [Bt, S, 1]
    inv_norm = jnp.where(sumsq > 0.0, jax.lax.rsqrt(sumsq), 0.0)

    if mean_mode:
        # 'Mean': normalize rows, mean over sentences, fold the post-mean
        # renorm scalar into the matmul output.
        t_norm = t32 * inv_norm                                     # [Bt, S, D]
        t_mean = jnp.mean(t_norm, axis=1, keepdims=True)            # [Bt, 1, D]
        m_sumsq = jnp.sum(t_mean * t_mean, axis=-1, keepdims=True)  # [Bt, 1, 1]
        out_scale = jnp.where(m_sumsq > 0.0, jax.lax.rsqrt(m_sumsq), 0.0)
        t_mm = t_mean.astype(im.dtype)                              # [Bt, 1, D]
    else:
        # 'NoMean': fold the per-row normalization into the matmul output.
        out_scale = inv_norm                                        # [Bt, S, 1]
        t_mm = t_raw                                                # [Bt, S, D]

    # --- similarity: batched contraction on the feature dim of BOTH operands
    #     (no in-kernel transpose; bf16 operands feed the MXU, f32 accumulate).
    sim_raw = jnp.einsum('bsd,bnd->bsn', t_mm, im,
                         preferred_element_type=jnp.float32)        # [Bt, S', N]
    sim = sim_raw * out_scale                                       # normalized
    if with_sim:
        sim_ref[...] = sim

    # --- softmax(100 * sim) over crops (f32 elementwise on all generations).
    logits = sim * 100.0
    m = jnp.max(logits, axis=-1, keepdims=True)
    e = jnp.exp(logits - m)
    denom = jnp.sum(e, axis=-1, keepdims=True)
    inv = pl.reciprocal(denom, approx=True)      # EUP vrcp slot
    inv = inv * (2.0 - denom * inv)              # one Newton step -> ~1e-7 rel
    p = e * inv
    prob_ref[...] = p

    # --- mean over sentences, first-argmax over crops (per batch element).
    if mean_mode:
        mean_probs = p[:, 0, :]                                     # [Bt, N]
    else:
        mean_probs = jnp.mean(p, axis=1)                            # [Bt, N]
    max_val = jnp.max(mean_probs, axis=-1, keepdims=True)           # [Bt, 1]
    idx = jax.lax.broadcasted_iota(jnp.int32, mean_probs.shape, 1)
    big = jnp.iinfo(jnp.int32).max
    cand = jnp.where(mean_probs >= max_val, idx, big)
    sel = jnp.min(cand, axis=-1, keepdims=True)                     # [Bt, 1]
    # Clamp so degenerate (NaN) inputs can't index out of bounds downstream.
    sel = jnp.clip(sel, 0, n - 1)
    sel_ref[...] = sel.astype(jnp.int32)


def baseline_clip_similarity(texts_z_raw, images_z, *,
                             sents_vector_type="NoMean",
                             return_similarity=True,
                             block_b=None):
    """Run the baselineCLIP similarity / softmax / selection hot path on TPU.

    texts_z_raw : [S, D] or [B, S, D] unnormalized text embeddings (f32/bf16)
    images_z    : [N, D] or [B, N, D] image (crop) embeddings (f32/bf16)
    Returns (similarity [.., S', N] or None, text_prob [.., S', N], sel_crop
    int32 [..]) where S' = 1 for 'Mean' and S' = S for 'NoMean'.
    """
    single = texts_z_raw.ndim == 2
    if single:
        texts_z_raw = texts_z_raw[None]
        images_z = images_z[None]

    # Keep bf16 for the MXU path; anything else goes to f32.
    if texts_z_raw.dtype not in (jnp.float32, jnp.bfloat16):
        texts_z_raw = texts_z_raw.astype(jnp.float32)
    images_z = images_z.astype(texts_z_raw.dtype)

    B, S, D = texts_z_raw.shape
    B2, N, D2 = images_z.shape
    assert B == B2 and D == D2

    mean_mode = sents_vector_type == "Mean"
    s_out = 1 if mean_mode else S

    in_bytes = jnp.dtype(texts_z_raw.dtype).itemsize
    n_out_mats = 2 if return_similarity else 1
    per_b_bytes = ((S + N) * D * in_bytes
                   + n_out_mats * s_out * N * 4 + 4)

    # Pick Bt against a conservative double-buffered VMEM budget (works with
    # v7x's 64 MiB physical / 32 MiB scoped VMEM, not just v5e/v6e's 128 MiB).
    budget = 8 * 1024 * 1024
    if block_b is not None:
        bt = int(block_b)
    else:
        bt = max(1, min(64, budget // max(2 * per_b_bytes, 1)))
    if B <= bt:
        bt = B                       # single grid step: full-dim block, any Bt
    elif bt % 8 != 0:
        bt = max(8, (bt // 8) * 8)   # keep the (Bt, 1) sel block sublane-aligned

    B_pad = _round_up(B, bt)
    if B_pad != B:
        # Only the batch dim is ever padded; zero rows give finite results.
        texts_z_raw = jnp.pad(texts_z_raw, ((0, B_pad - B), (0, 0), (0, 0)))
        images_z = jnp.pad(images_z, ((0, B_pad - B), (0, 0), (0, 0)))

    grid = (B_pad // bt,)

    out_shapes = []
    out_specs = []
    if return_similarity:
        out_shapes.append(jax.ShapeDtypeStruct((B_pad, s_out, N), jnp.float32))
        out_specs.append(pl.BlockSpec((bt, s_out, N), lambda b: (b, 0, 0)))
    out_shapes.append(jax.ShapeDtypeStruct((B_pad, s_out, N), jnp.float32))
    out_specs.append(pl.BlockSpec((bt, s_out, N), lambda b: (b, 0, 0)))
    out_shapes.append(jax.ShapeDtypeStruct((B_pad, 1), jnp.int32))
    out_specs.append(pl.BlockSpec((bt, 1), lambda b: (b, 0)))

    flops = 2 * B_pad * s_out * N * D + 10 * B_pad * s_out * N
    transcendentals = B_pad * (s_out * N + S + 2 * s_out)   # exp + rsqrt + recip
    bytes_accessed = (B_pad * (S + N) * D * in_bytes
                      + B_pad * (n_out_mats * s_out * N * 4 + 4))

    kernel = functools.partial(_clip_kernel, mean_mode=mean_mode,
                               with_sim=return_similarity)

    outs = pl.pallas_call(
        kernel,
        out_shape=tuple(out_shapes),
        grid_spec=pltpu.PrefetchScalarGridSpec(
            num_scalar_prefetch=0,
            grid=grid,
            in_specs=[
                pl.BlockSpec((bt, S, D), lambda b: (b, 0, 0)),
                pl.BlockSpec((bt, N, D), lambda b: (b, 0, 0)),
            ],
            out_specs=out_specs,
        ),
        # Every output (including sel) is now blocked per grid step, so the
        # batch axis is independent -> "parallel" (shards across v7x's 2 TCs).
        compiler_params=pltpu.CompilerParams(
            dimension_semantics=("parallel",),
            vmem_limit_bytes=32 * 1024 * 1024),
        cost_estimate=pl.CostEstimate(flops=flops,
                                      transcendentals=transcendentals,
                                      bytes_accessed=bytes_accessed),
    )(texts_z_raw, images_z)

    if return_similarity:
        sim_p, prob_p, sel_p = outs
    else:
        prob_p, sel_p = outs
        sim_p = None

    def trim(x):
        return x[:B] if B_pad != B else x

    sel = trim(sel_p)[:, 0]
    prob = trim(prob_p)
    sim = trim(sim_p) if sim_p is not None else None
    if single:
        sel = sel[0]
        prob = prob[0]
        sim = sim[0] if sim is not None else None
    return sim, prob, sel


def _reference(texts_z_raw, images_z, sents_vector_type="NoMean"):
    t = texts_z_raw / jnp.linalg.norm(texts_z_raw, axis=-1, keepdims=True)
    if sents_vector_type == "Mean":
        t = jnp.mean(t, axis=0, keepdims=True)
        t = t / jnp.linalg.norm(t, axis=-1, keepdims=True)
    sim = t @ images_z.T
    prob = jax.nn.softmax(100.0 * sim, axis=-1)
    sel = jnp.argmax(jnp.mean(prob, axis=0))
    return sim, prob, sel


if __name__ == "__main__":
    # Small synthetic shapes: S=8 tokenized sentences, N=16 detected crops,
    # D=128 CLIP-like embedding dim, plus N bounding boxes from the detector.
    key = jax.random.PRNGKey(0)
    k_txt, k_img, k_box, k_btxt, k_bimg, k_b2t, k_b2i = jax.random.split(key, 7)
    S, N, D = 8, 16, 128

    texts_z_raw = jax.random.normal(k_txt, (S, D), dtype=jnp.float32)
    images_z = jax.random.normal(k_img, (N, D), dtype=jnp.float32)
    # Synthetic 'ext_output_df' boxes [xmin, ymin, xmax, ymax] per crop.
    boxes = jax.random.uniform(k_box, (N, 4), dtype=jnp.float32) * 224.0

    # TODO(synk): CLIP text/image encoders and YOLO/FRCNN/SSD detection +
    # PIL cropping + pandas filtering are external models / host-side glue;
    # they are represented here by the synthetic embeddings / boxes above.

    # --- single problem, 'NoMean' (module default path) ---
    sim, prob, sel = baseline_clip_similarity(
        texts_z_raw, images_z, sents_vector_type="NoMean")
    jax.block_until_ready((sim, prob, sel))

    # pred_bbox gather (plain-JAX glue, mirrors ext_output_df.loc[sel_crop]).
    pred_bbox = jnp.take(boxes, sel, axis=0)
    jax.block_until_ready(pred_bbox)

    ref_sim, ref_prob, ref_sel = _reference(texts_z_raw, images_z, "NoMean")
    assert jnp.allclose(sim, ref_sim, atol=1e-4, rtol=1e-4)
    assert jnp.allclose(prob, ref_prob, atol=1e-4, rtol=1e-4)
    assert int(sel) == int(ref_sel)

    # --- single problem, 'Mean' sentence-vector variant ---
    sim_m, prob_m, sel_m = baseline_clip_similarity(
        texts_z_raw, images_z, sents_vector_type="Mean")
    jax.block_until_ready((sim_m, prob_m, sel_m))
    ref_sim_m, ref_prob_m, ref_sel_m = _reference(texts_z_raw, images_z, "Mean")
    assert jnp.allclose(sim_m, ref_sim_m, atol=1e-4, rtol=1e-4)
    assert jnp.allclose(prob_m, ref_prob_m, atol=1e-4, rtol=1e-4)
    assert int(sel_m) == int(ref_sel_m)

    # --- batched path, single grid step (Bt == B) ---
    Bb = 4
    texts_b = jax.random.normal(k_btxt, (Bb, S, D), dtype=jnp.float32)
    images_b = jax.random.normal(k_bimg, (Bb, N, D), dtype=jnp.float32)
    sim_b, prob_b, sel_b = baseline_clip_similarity(
        texts_b, images_b, sents_vector_type="NoMean")
    jax.block_until_ready((sim_b, prob_b, sel_b))
    for bi in range(Bb):
        r_sim, r_prob, r_sel = _reference(texts_b[bi], images_b[bi], "NoMean")
        assert jnp.allclose(sim_b[bi], r_sim, atol=1e-4, rtol=1e-4)
        assert jnp.allclose(prob_b[bi], r_prob, atol=1e-4, rtol=1e-4)
        assert int(sel_b[bi]) == int(r_sel)

    # --- batched path: multi-step 'parallel' grid, batch padding, bf16 MXU,
    #     similarity output dropped (prob/sel only) ---
    B2 = 12
    texts_b2 = jax.random.normal(k_b2t, (B2, S, D), dtype=jnp.float32)
    images_b2 = jax.random.normal(k_b2i, (B2, N, D), dtype=jnp.float32)
    _, prob2, sel2 = baseline_clip_similarity(
        texts_b2.astype(jnp.bfloat16), images_b2.astype(jnp.bfloat16),
        sents_vector_type="NoMean", return_similarity=False, block_b=8)
    jax.block_until_ready((prob2, sel2))
    tq = texts_b2.astype(jnp.bfloat16).astype(jnp.float32)
    iq = images_b2.astype(jnp.bfloat16).astype(jnp.float32)
    for bi in range(B2):
        _, r_prob, _ = _reference(tq[bi], iq[bi], "NoMean")
        assert jnp.allclose(prob2[bi], r_prob, atol=2e-2, rtol=2e-2)
        mean_ref = jnp.mean(r_prob, axis=0)
        # Selected crop must be (numerically) the argmax of the reference.
        assert float(mean_ref[int(sel2[bi])]) >= float(jnp.max(mean_ref)) - 1e-3

    print("KERNEL_OK")
</pallas_src>

<mosaic_0001>
module attributes {stable_mosaic.version = 11 : i64} {
  func.func @_clip_kernel(%arg0: i32, %arg1: memref<1x8x128xf32, #tpu.memory_space<vmem>>, %arg2: memref<1x16x128xf32, #tpu.memory_space<vmem>>, %arg3: memref<1x8x16xf32, #tpu.memory_space<vmem>>, %arg4: memref<1x8x16xf32, #tpu.memory_space<vmem>>, %arg5: memref<1x1xi32, #tpu.memory_space<vmem>>) attributes {dimension_semantics = [#tpu.dimension_semantics<parallel>], iteration_bounds = array<i64: 1>, scalar_prefetch = 0 : i64, scratch_operands = 0 : i64, tpu.core_type = #tpu.core_type<tc>, window_params = [{transform_indices = @transform_0, window_bounds = array<i64: 1, 8, 128>}, {transform_indices = @transform_1, window_bounds = array<i64: 1, 16, 128>}, {transform_indices = @transform_2, window_bounds = array<i64: 1, 8, 16>}, {transform_indices = @transform_3, window_bounds = array<i64: 1, 8, 16>}, {transform_indices = @transform_4, window_bounds = array<i64: 1, 1>}]} {
    %c0 = arith.constant 0 : index
    %c0_0 = arith.constant 0 : index
    %c0_1 = arith.constant 0 : index
    %0 = vector.load %arg1[%c0, %c0_0, %c0_1] : memref<1x8x128xf32, #tpu.memory_space<vmem>>, vector<1x8x128xf32>
    %c0_2 = arith.constant 0 : index
    %c0_3 = arith.constant 0 : index
    %c0_4 = arith.constant 0 : index
    %1 = vector.load %arg2[%c0_2, %c0_3, %c0_4] : memref<1x16x128xf32, #tpu.memory_space<vmem>>, vector<1x16x128xf32>
    %2 = arith.mulf %0, %0 : vector<1x8x128xf32>
    %cst = arith.constant dense<0.000000e+00> : vector<1x8xf32>
    %3 = vector.multi_reduction <add>, %2, %cst [2] : vector<1x8x128xf32> to vector<1x8xf32>
    %4 = vector.shape_cast %3 : vector<1x8xf32> to vector<1x8x1xf32>
    %cst_5 = arith.constant 0.000000e+00 : f32
    %5 = vector.broadcast %cst_5 : f32 to vector<1x8x1xf32>
    %6 = arith.cmpf ogt, %4, %5 : vector<1x8x1xf32>
    %7 = math.rsqrt %4 : vector<1x8x1xf32>
    %cst_6 = arith.constant 0.000000e+00 : f32
    %8 = vector.broadcast %cst_6 : f32 to vector<1x8x1xf32>
    %9 = arith.select %6, %7, %8 : vector<1x8x1xi1>, vector<1x8x1xf32>
    "tpu.trace_start"() <{level = 10 : i32, message = "bsd,bnd->bsn"}> : () -> ()
    %cst_7 = arith.constant dense<0.000000e+00> : vector<1x8x16xf32>
    %10 = tpu.matmul %0, %1, %cst_7 {dimension_numbers = #tpu.dot_dimension_numbers<[2], [2], [1], [1], [0, 0, 0, 1, 1, 1], [0], [0]>} : vector<1x8x128xf32>, vector<1x16x128xf32>, vector<1x8x16xf32> -> vector<1x8x16xf32>
    "tpu.trace_stop"() : () -> ()
    %11 = vector.broadcast %9 : vector<1x8x1xf32> to vector<1x8x16xf32>
    %12 = arith.mulf %10, %11 : vector<1x8x16xf32>
    %c0_8 = arith.constant 0 : index
    %c0_9 = arith.constant 0 : index
    %c0_10 = arith.constant 0 : index
    %13 = vector.load %arg3[%c0_8, %c0_9, %c0_10] : memref<1x8x16xf32, #tpu.memory_space<vmem>>, vector<1x8x16xf32>
    tpu.vector_store %arg3[%c0_8, %c0_9, %c0_10], %12 {strides = array<i32>} : memref<1x8x16xf32, #tpu.memory_space<vmem>>, vector<1x8x16xf32>,
    %cst_11 = arith.constant 1.000000e+02 : f32
    %14 = vector.broadcast %cst_11 : f32 to vector<1x8x16xf32>
    %15 = arith.mulf %12, %14 : vector<1x8x16xf32>
    %cst_12 = arith.constant dense<0xFF800000> : vector<1x8xf32>
    %16 = vector.multi_reduction <maximumf>, %15, %cst_12 [2] : vector<1x8x16xf32> to vector<1x8xf32>
    %17 = vector.shape_cast %16 : vector<1x8xf32> to vector<1x8x1xf32>
    %18 = vector.broadcast %17 : vector<1x8x1xf32> to vector<1x8x16xf32>
    %19 = arith.subf %15, %18 : vector<1x8x16xf32>
    %20 = math.exp %19 : vector<1x8x16xf32>
    %cst_13 = arith.constant dense<0.000000e+00> : vector<1x8xf32>
    %21 = vector.multi_reduction <add>, %20, %cst_13 [2] : vector<1x8x16xf32> to vector<1x8xf32>
    %22 = vector.shape_cast %21 : vector<1x8xf32> to vector<1x8x1xf32>
    %23 = tpu.reciprocal %22 {approx = true} : vector<1x8x1xf32> -> vector<1x8x1xf32>
    %24 = arith.mulf %22, %23 : vector<1x8x1xf32>
    %cst_14 = arith.constant 2.000000e+00 : f32
    %25 = vector.broadcast %cst_14 : f32 to vector<1x8x1xf32>
    %26 = arith.subf %25, %24 : vector<1x8x1xf32>
    %27 = arith.mulf %23, %26 : vector<1x8x1xf32>
    %28 = vector.broadcast %27 : vector<1x8x1xf32> to vector<1x8x16xf32>
    %29 = arith.mulf %20, %28 : vector<1x8x16xf32>
    %c0_15 = arith.constant 0 : index
    %c0_16 = arith.constant 0 : index
    %c0_17 = arith.constant 0 : index
    %30 = vector.load %arg4[%c0_15, %c0_16, %c0_17] : memref<1x8x16xf32, #tpu.memory_space<vmem>>, vector<1x8x16xf32>
    tpu.vector_store %arg4[%c0_15, %c0_16, %c0_17], %29 {strides = array<i32>} : memref<1x8x16xf32, #tpu.memory_space<vmem>>, vector<1x8x16xf32>,
    %cst_18 = arith.constant dense<0.000000e+00> : vector<1x16xf32>
    %31 = vector.multi_reduction <add>, %29, %cst_18 [1] : vector<1x8x16xf32> to vector<1x16xf32>
    %cst_19 = arith.constant 8.000000e+00 : f32
    %32 = vector.broadcast %cst_19 : f32 to vector<1x16xf32>
    %33 = arith.divf %31, %32 : vector<1x16xf32>
    %cst_20 = arith.constant dense<0xFF800000> : vector<1xf32>
    %34 = vector.multi_reduction <maximumf>, %33, %cst_20 [1] : vector<1x16xf32> to vector<1xf32>
    %35 = vector.shape_cast %34 : vector<1xf32> to vector<1x1xf32>
    %36 = tpu.iota {dimensions = array<i32: 1>} : vector<1x16xi32>
    %37 = vector.broadcast %35 : vector<1x1xf32> to vector<1x16xf32>
    %38 = arith.cmpf oge, %33, %37 : vector<1x16xf32>
    %c2147483647_i32 = arith.constant 2147483647 : i32
    %39 = vector.broadcast %c2147483647_i32 : i32 to vector<1x16xi32>
    %40 = arith.select %38, %36, %39 : vector<1x16xi1>, vector<1x16xi32>
    %cst_21 = arith.constant dense<2147483647> : vector<1xi32>
    %41 = vector.multi_reduction <minsi>, %40, %cst_21 [1] : vector<1x16xi32> to vector<1xi32>
    %42 = vector.shape_cast %41 : vector<1xi32> to vector<1x1xi32>
    %c0_i32 = arith.constant 0 : i32
    %c15_i32 = arith.constant 15 : i32
    %43 = vector.broadcast %c0_i32 : i32 to vector<1x1xi32>
    %44 = arith.maxsi %43, %42 : vector<1x1xi32>
    %45 = vector.broadcast %c15_i32 : i32 to vector<1x1xi32>
    %46 = arith.minsi %45, %44 : vector<1x1xi32>
    %c0_22 = arith.constant 0 : index
    %c0_23 = arith.constant 0 : index
    %47 = vector.load %arg5[%c0_22, %c0_23] : memref<1x1xi32, #tpu.memory_space<vmem>>, vector<1x1xi32>
    tpu.vector_store %arg5[%c0_22, %c0_23], %46 {strides = array<i32>} : memref<1x1xi32, #tpu.memory_space<vmem>>, vector<1x1xi32>,
    return
  }
  func.func @transform_0(%arg0: i32) -> (i32, i32, i32) {
    %c0_i32 = arith.constant 0 : i32
    %c0_i32_0 = arith.constant 0 : i32
    %c0_i32_1 = arith.constant 0 : i32
    return %arg0, %c0_i32, %c0_i32_0 : i32, i32, i32
  }
  func.func @transform_1(%arg0: i32) -> (i32, i32, i32) {
    %c0_i32 = arith.constant 0 : i32
    %c0_i32_0 = arith.constant 0 : i32
    %c0_i32_1 = arith.constant 0 : i32
    return %arg0, %c0_i32, %c0_i32_0 : i32, i32, i32
  }
  func.func @transform_2(%arg0: i32) -> (i32, i32, i32) {
    %c0_i32 = arith.constant 0 : i32
    %c0_i32_0 = arith.constant 0 : i32
    %c0_i32_1 = arith.constant 0 : i32
    return %arg0, %c0_i32, %c0_i32_0 : i32, i32, i32
  }
  func.func @transform_3(%arg0: i32) -> (i32, i32, i32) {
    %c0_i32 = arith.constant 0 : i32
    %c0_i32_0 = arith.constant 0 : i32
    %c0_i32_1 = arith.constant 0 : i32
    return %arg0, %c0_i32, %c0_i32_0 : i32, i32, i32
  }
  func.func @transform_4(%arg0: i32) -> (i32, i32) {
    %c0_i32 = arith.constant 0 : i32
    %c0_i32_0 = arith.constant 0 : i32
    return %arg0, %c0_i32 : i32, i32
  }
}

</mosaic_0001>

<llo_original>
// kernel: tpu_custom_call.1
$region0: #{tpu_custom_call.1}
  #allocation0 [shape = 'u32[]', space=smem, size = 0x4, offset = 0x4, fixed_abs, tag = 'smem constant byte address 0x4 - core index']
  #allocation1 [shape = 'u32[72,128]{1,0:T(1,128)}', space=vmem, size = 0x9000, scoped, tag = 'internal scratch']
  %s0 = inlined_call_operand.hbm [shape: f32[1,8,128], index: 0, kind: input, shape index: {}]
  %s1 = inlined_call_operand.hbm [shape: f32[1,16,128], index: 1, kind: input, shape index: {}]
  %s2 = inlined_call_operand.hbm [shape: f32[1,8,16], index: 2, kind: output, shape index: {0}]
  %s3 = inlined_call_operand.hbm [shape: f32[1,8,16], index: 3, kind: output, shape index: {1}]
  %s4 = inlined_call_operand.hbm [shape: s32[1,1], index: 4, kind: output, shape index: {2}]
  %5 = xla_tuple %s2, %s3, %s4
  %s6 = sld [smem:[#allocation0]]
  $region42: #{tpu_custom_call.1} parent=0
    _
  %s8 = ssub.s32 1, %s6
  %s9 = scalar_select 0, %s8, %s6
  $region1: #{tpu_custom_call.1} parent=0
    #allocation2 [shape = 'u8[4096]{0}', space=vmem, size = 0x1000, scoped, tag = 'input window, operand 0, single buffered']
    #allocation3 [shape = 's32[1]{0}', space=sflag, size = 0x4, scoped, tag = 'scoped memory for tpu_custom_call.1']
    #allocation4 [shape = 's32[1]{0}', space=sflag, size = 0x4, scoped, tag = 'scoped memory for tpu_custom_call.1']
    #allocation5 [shape = 'u8[8192]{0}', space=vmem, size = 0x2000, scoped, tag = 'input window, operand 1, single buffered']
    #allocation6 [shape = 's32[1]{0}', space=sflag, size = 0x4, scoped, tag = 'scoped memory for tpu_custom_call.1']
    #allocation7 [shape = 'u8[4096]{0}', space=vmem, size = 0x1000, scoped, tag = 'output window, operand 0, single buffered']
    #allocation8 [shape = 'u8[4096]{0}', space=vmem, size = 0x1000, scoped, tag = 'output window, operand 1, single buffered']
    #allocation9 [shape = 's32[1]{0}', space=sflag, size = 0x4, scoped, tag = 'scoped memory for tpu_custom_call.1']
    #allocation10 [shape = 'u8[512]{0}', space=vmem, size = 0x400, scoped, tag = 'output window, operand 2, single buffered']
    %10 = vsyncpa [#allocation3], 0
    %11 = vsyncpa [#allocation6], 0
    %12 = vsyncpa [#allocation4], 0
    %13 = vsyncpa [#allocation9], 0
    // Predicated region
    $region2: #{tpu_custom_call.1} parent=1 // pred_check
      _
    $region3: #{tpu_custom_call.1} parent=1 // pred_check_branch
      %15 = sbr.rel (0) target = $region5
    $region4: #{tpu_custom_call.1} parent=1 // pred_region
      %17 = vsyncadd [#allocation3], 0
      %s19 = sshll.u32 %s0, 4
      %s20 = int_to_ptr.hbm [resolvable:$true] %s19
      %s21 = sshll.u32 [#allocation2], 4
      %s22 = int_to_ptr.vmem [resolvable:$true] %s21
      %24 = dma.hbm_to_vmem [thread:$0]  %s20, 128, %s22, [#allocation3]
    $region5: #{tpu_custom_call.1} parent=1 // pred_fallthru
      _
    // Predicated region
    $region6: #{tpu_custom_call.1} parent=1 // pred_check
      _
    $region7: #{tpu_custom_call.1} parent=1 // pred_check_branch
      %26 = sbr.rel (0) target = $region9
    $region8: #{tpu_custom_call.1} parent=1 // pred_region
      %28 = vsyncadd [#allocation6], 0
      %s29 = sshll.u32 %s1, 4
      %s30 = int_to_ptr.hbm [resolvable:$true] %s29
      %s31 = sshll.u32 [#allocation5], 4
      %s32 = int_to_ptr.vmem [resolvable:$true] %s31
      %37 = dma.hbm_to_vmem [thread:$0]  %s30, 256, %s32, [#allocation6], 128, 128, 8
    $region9: #{tpu_custom_call.1} parent=1 // pred_fallthru
      _
    // Predicated region
    $region10: #{tpu_custom_call.1} parent=1 // pred_check
      _
    $region11: #{tpu_custom_call.1} parent=1 // pred_check_branch
      %39 = sbr.rel (0) target = $region13
    $region12: #{tpu_custom_call.1} parent=1 // pred_region
      %41 = dma.done [#allocation3], 128
    $region13: #{tpu_custom_call.1} parent=1 // pred_fallthru
      _
    // Predicated region
    $region14: #{tpu_custom_call.1} parent=1 // pred_check
      _
    $region15: #{tpu_custom_call.1} parent=1 // pred_check_branch
      %43 = sbr.rel (0) target = $region17
    $region16: #{tpu_custom_call.1} parent=1 // pred_region
      %45 = dma.done [#allocation6], 256
    $region17: #{tpu_custom_call.1} parent=1 // pred_fallthru
      _
    %v46 = vld [vmem:[#allocation2] sm:$0xff]
    %v47 = vld [vmem:[#allocation5] sm:$0xff]
    %v48 = vld [vmem:[#allocation5 + $0x8] sm:$0xff]
    %v49 = vmul.f32 %v46, %v46
    %50 = vadd.xlane.f32.xlu0 %v49
    %v51 = vpop.xlane.xlu0 %50
    %vm52 = vcmp.gt.f32.partialorder %v51, 0.0
    %v53 = vrsqrt.pop %v51
    %v54 = vmul.f32 %v53, %v51
    %v55 = vmul.f32 %v54, %v53
    %v56 = vmul.f32 0.5, %v55
    %v57 = vsub.f32 1.5, %v56
    %v58 = vmul.f32 %v53, %v57
    %vm59 = vweird.f32 %v51
    %vm60 = vweird.f32 %v53
    %vm61 = vmor %vm59, %vm60
    %v62 = vsel %vm61, %v53, %v58
    %v63 = vsel %vm52, %v62, 0.0
    %64 = vmatpush.xpose.msra.mxu0 0.0
    %65 = vmatpush.xpose.msra.mxu0 0.0
    %66 = vmatpush.xpose.msra.mxu0 0.0
    %67 = vmatpush.xpose.msra.mxu0 0.0
    %68 = vmatpush.xpose.msra.mxu0 0.0
    %69 = vmatpush.xpose.msra.mxu0 0.0
    %70 = vmatpush.xpose.msra.mxu0 0.0
    %71 = vmatpush.xpose.msra.mxu0 0.0
    %72 = vmatpush.xpose.msra.mxu0 0.0
    %73 = vmatpush.xpose.msra.mxu0 0.0
    %74 = vmatpush.xpose.msra.mxu0 0.0
    %75 = vmatpush.xpose.msra.mxu0 0.0
    %76 = vmatpush.xpose.msra.mxu0 0.0
    %77 = vmatpush.xpose.msra.mxu0 0.0
    %78 = vmatpush.xpose.msra.mxu0 %v48
    %79 = vmatpush.xpose.msra.mxu0 %v47
    %80 = vmatmul.f32.gmra.mxu0 %v46
    %v81 = vpop.f32.mrf.mxu0
    %v82 = vadd.f32 0.0, %v81
    %83 = vdwg.mxu0
    %v84 = vmul.f32 %v82, %v63
    %vm85 = vcmask 130048
    %86 = vst.msk [vmem:[#allocation7] sm:$0xff] %vm85, %v84
    %v87 = vmul.f32 %v84, 100.0
    %v88 = vsel %vm85, %v87, -inf
    %89 = vmax.xlane.f32.xlu0 %v88
    %v90 = vpop.xlane.xlu0 %89
    %v91 = vsub.f32 %v87, %v90
    %v92 = vmul.f32 %v91, 1.442695
    %v93 = vpow.pop %v92
    %v94 = vsel %vm85, %v93, 0.0
    %95 = vadd.xlane.f32.xlu0 %v94
    %v96 = vpop.xlane.xlu0 %95
    %v97 = vrcp.pop %v96
    %v98 = vmul.f32 %v96, %v97
    %v99 = vsub.f32 2.0, %v98
    %v100 = vmul.f32 %v97, %v99
    %v101 = vmul.f32 %v93, %v100
    %102 = vst.msk [vmem:[#allocation8] sm:$0xff] %vm85, %v101
    %v103 = vsel %vm85, %v101, 0.0
    %v104 = vrot.slane %v103, 4
    %v105 = vadd.f32 %v103, %v104
    %v106 = vrot.slane %v105, 2
    %v107 = vadd.f32 %v105, %v106
    %v108 = vrot.slane %v107, 1
    %v109 = vadd.f32 %v107, %v108
    %v110 = vrcp.pop 8.0
    %v111 = vmul.f32 8.0, %v110
    %v112 = vsub.f32 1.0, %v111
    %v113 = vmul.f32 %v110, %v112
    %v114 = vadd.f32 %v110, %v113
    %vm115 = vweird.f32 %v110
    %v116 = vsel %vm115, %v110, %v114
    %v117 = vmul.f32 %v109, %v116
    %v118 = vsel %vm85, %v117, -inf
    %119 = vmax.xlane.f32.xlu0 %v118
    %v120 = vpop.xlane.xlu0 %119
    %v121 = vlaneseq
    %v122 = vand.u32 %v121, 127
    %vm123 = vcmp.ge.f32.partialorder %v117, %v120
    %v124 = vsel %vm123, %v122, 2147483647
    %v125 = vsel %vm85, %v124, 2147483647
    %v126 = vand.u32 %v125, 65535
    %v127 = vshra.s32 %v125, 16
    %v128 = vcvt.s32.f32 %v126
    %v129 = vcvt.s32.f32 %v127
    %130 = vmin.xlane.f32.xlu0 %v129
    %v131 = vpop.xlane.xlu0 %130
    %vm132 = vcmp.eq.f32.partialorder %v129, %v131
    %v133 = vsel %vm132, %v128, inf
    %134 = vmin.xlane.f32.xlu0 %v133
    %v135 = vpop.xlane.xlu0 %134
    %v136 = vcvt.f32.s32 %v135
    %v137 = vcvt.f32.s32 %v131
    %v138 = vshll.u32 %v137, 16
    %v139 = vadd.s32 %v138, %v136
    %vm140 = vcmp.gt.s32.totalorder %v139, 0
    %v141 = vsel %vm140, %v139, 0
    %vm142 = vcmp.lt.s32.totalorder %v141, 15
    %v143 = vsel %vm142, %v141, 15
    %vm144 = vcmask 0
    %145 = vst.msk [vmem:[#allocation10] sm:$0x1] %vm144, %v143
    // Predicated region
    $region18: #{tpu_custom_call.1} parent=1 // pred_check
      _
    $region19: #{tpu_custom_call.1} parent=1 // pred_check_branch
      %147 = sbr.rel (0) target = $region21
    $region20: #{tpu_custom_call.1} parent=1 // pred_region
      %149 = vsyncadd [#allocation4], 0
      %s151 = sshll.u32 [#allocation7], 4
      %s152 = int_to_ptr.vmem [resolvable:$true] %s151
      %s153 = sshll.u32 %s2, 4
      %s154 = int_to_ptr.hbm [resolvable:$true] %s153
      %156 = dma.vmem_to_hbm [thread:$0]  %s152, 128, %s154, [#allocation4]
    $region21: #{tpu_custom_call.1} parent=1 // pred_fallthru
      _
    // Predicated region
    $region22: #{tpu_custom_call.1} parent=1 // pred_check
      _
    $region23: #{tpu_custom_call.1} parent=1 // pred_check_branch
      %158 = sbr.rel (0) target = $region25
    $region24: #{tpu_custom_call.1} parent=1 // pred_region
      %160 = vsyncadd [#allocation9], 0
      %s162 = sshll.u32 [#allocation8], 4
      %s163 = int_to_ptr.vmem [resolvable:$true] %s162
      %s164 = sshll.u32 %s3, 4
      %s165 = int_to_ptr.hbm [resolvable:$true] %s164
      %167 = dma.vmem_to_hbm [thread:$0]  %s163, 128, %s165, [#allocation9]
    $region25: #{tpu_custom_call.1} parent=1 // pred_fallthru
      _
    // Predicated region
    $region26: #{tpu_custom_call.1} parent=1 // pred_check
      _
    $region27: #{tpu_custom_call.1} parent=1 // pred_check_branch
      %169 = sbr.rel (0) target = $region29
    $region28: #{tpu_custom_call.1} parent=1 // pred_region
      %171 = vsyncadd [#allocation9], 0
      %s173 = sshll.u32 [#allocation10], 4
      %s174 = int_to_ptr.vmem [resolvable:$true] %s173
      %s175 = sshll.u32 %s4, 4
      %s176 = int_to_ptr.hbm [resolvable:$true] %s175
      %178 = dma.vmem_to_hbm [thread:$0]  %s174, 16, %s176, [#allocation9]
    $region29: #{tpu_custom_call.1} parent=1 // pred_fallthru
      _
    // Predicated region
    $region30: #{tpu_custom_call.1} parent=1 // pred_check
      _
    $region31: #{tpu_custom_call.1} parent=1 // pred_check_branch
      %180 = sbr.rel (0) target = $region33
    $region32: #{tpu_custom_call.1} parent=1 // pred_region
      %182 = dma.done [#allocation4], 128
    $region33: #{tpu_custom_call.1} parent=1 // pred_fallthru
      _
    // Predicated region
    $region34: #{tpu_custom_call.1} parent=1 // pred_check
      _
    $region35: #{tpu_custom_call.1} parent=1 // pred_check_branch
      %184 = sbr.rel (0) target = $region37
    $region36: #{tpu_custom_call.1} parent=1 // pred_region
      %186 = dma.done [#allocation9], 128
    $region37: #{tpu_custom_call.1} parent=1 // pred_fallthru
      _
    // Predicated region
    $region38: #{tpu_custom_call.1} parent=1 // pred_check
      _
    $region39: #{tpu_custom_call.1} parent=1 // pred_check_branch
      %188 = sbr.rel (0) target = $region41
    $region40: #{tpu_custom_call.1} parent=1 // pred_region
      %190 = dma.done [#allocation9], 16
    $region41: #{tpu_custom_call.1} parent=1 // pred_fallthru
      _
    %191 = vsyncpa [#allocation3], 1
    %192 = vsyncpa [#allocation6], 1
    %193 = vsyncpa [#allocation4], 1
    %194 = vsyncpa [#allocation9], 1

</llo_original>
